<compile_context>
chip_gen: v5e
topology: v5e:2x2
jax: 0.10.0
libtpu: 0.0.40
codegen_flags: <defaults>
</compile_context>

<pallas_src>
import functools

import jax
import jax.numpy as jnp
from jax.experimental import pallas as pl
from jax.experimental.pallas import tpu as pltpu


def _round_up(x, m):
    return ((x + m - 1) // m) * m


# -----------------------------------------------------------------------------
# Kernel body: full critic forward for one batch tile (feature-major).
# -----------------------------------------------------------------------------
def _critic_kernel(h1d, h2d, h3d, a3_off, hoff,
                   x_ref, wa_ref, w2_ref, w3h_ref, pack_ref, out_ref):
    cdt = x_ref.dtype

    # Small packed params (f32 column vectors) at 8-aligned row offsets:
    # rows [0,h2d)=b2, [hoff,hoff+h3d)=w4, [2*hoff]=b4.
    b2 = pack_ref[0:h2d, :]                      # (h2d, 1)
    w4 = pack_ref[hoff:hoff + h3d, :]            # (h3d, 1)
    b4 = pack_ref[2 * hoff:2 * hoff + 1, :]      # (1, 1)

    # Fused "first touch" matmul (one MXU pass):
    #   rows [0, h1d)             -> z1 = W1 @ [obs; act] + b1
    #   rows [a3_off, a3_off+h3d) -> W3_act @ act + b3   (layer-3 act-side)
    # (b1 / b3 ride on the ones-row appended to x in the wrapper).
    zA = jnp.dot(wa_ref[...], x_ref[...], preferred_element_type=jnp.float32)

    h1 = jnp.maximum(zA[0:h1d, :], 0.0)                          # (h1d, tile_b)

    z2 = jnp.dot(w2_ref[...], h1.astype(cdt),
                 preferred_element_type=jnp.float32) + b2
    h2 = jnp.maximum(z2, 0.0)                                    # (h2d, tile_b)

    z3 = (jnp.dot(w3h_ref[...], h2.astype(cdt),
                  preferred_element_type=jnp.float32)
          + zA[a3_off:a3_off + h3d, :])
    h3 = jnp.maximum(z3, 0.0)                                    # (h3d, tile_b)

    # Output Linear(H3 -> 1): VPU multiply + sublane reduce; the result is the
    # lane-dense (1, tile_b) row we store directly.
    q = jnp.sum(h3 * w4, axis=0, keepdims=True) + b4
    out_ref[...] = q.astype(out_ref.dtype)


# -----------------------------------------------------------------------------
# Wrapper: batch-tiled pallas_call with VMEM-resident packed weights.
# -----------------------------------------------------------------------------
def mlp_critic_td3_forward(obs, act, params, *, tile_b=4096,
                           compute_dtype=jnp.bfloat16):
    """Q(obs, act) for every batch row. compute_dtype=jnp.float32 is the
    exact-precision escape hatch (dots always accumulate in f32 either way)."""
    B, obs_dim = obs.shape
    act_dim = act.shape[1]
    h1d = params["w1"].shape[1]
    h2d = params["w2"].shape[1]
    h3d = params["w3"].shape[1]
    din = obs_dim + act_dim

    # --- batch tiling: lane-dense tiles (multiples of 128) -------------------
    # Large default tile amortizes per-grid-step overhead; keep >=2 grid steps
    # when the batch allows it so both v7x TensorCores get a "parallel" step
    # (single-TC v5e/v6e just see one extra cheap step).
    half = _round_up(max(-(-B // 2), 1), 128)
    tile_b = max(128, min(_round_up(tile_b, 128), half))
    bp = _round_up(B, tile_b)
    num_tiles = bp // tile_b

    # --- feature-major weight packing (stored (out, in)) ---------------------
    din_aug = din + 1                       # +1 "ones" row carries b1 / b3
    din_p = _round_up(din_aug, 16)          # bf16 sublane alignment
    a3_off = _round_up(h1d, 8)              # aligned row offset of the z3 act block

    w1_t = params["w1"].T.astype(jnp.float32)           # (h1d, din)
    w3_t = params["w3"].T.astype(jnp.float32)           # (h3d, h2d + act_dim)

    wa = jnp.zeros((a3_off + h3d, din_p), jnp.float32)
    wa = wa.at[:h1d, :din].set(w1_t)
    wa = wa.at[:h1d, din].set(params["b1"].reshape(-1).astype(jnp.float32))
    wa = wa.at[a3_off:, obs_dim:din].set(w3_t[:, h2d:])
    wa = wa.at[a3_off:, din].set(params["b3"].reshape(-1).astype(jnp.float32))
    wa_c = wa.astype(compute_dtype)

    w2_c = params["w2"].T.astype(compute_dtype)          # (h2d, h1d)
    w3h_c = w3_t[:, :h2d].astype(compute_dtype)          # (h3d, h2d)

    # Remaining small params in ONE tiny f32 buffer (fewer DMA descriptors):
    # column vectors [b2 | w4 | b4] stacked at 8-aligned row groups.
    hoff = _round_up(max(h2d, h3d, 1), 8)
    pack = jnp.zeros((3 * hoff, 1), jnp.float32)
    pack = pack.at[0:h2d, 0].set(params["b2"].reshape(-1).astype(jnp.float32))
    pack = pack.at[hoff:hoff + h3d, 0].set(
        params["w4"].reshape(-1).astype(jnp.float32))
    pack = pack.at[2 * hoff, 0].set(params["b4"].reshape(()).astype(jnp.float32))

    # --- feature-major input: column b = [obs_b; act_b; 1; 0-pad] ------------
    ones = jnp.ones((B, 1), obs.dtype)
    x = jnp.concatenate([obs, act, ones], axis=-1)        # (B, din+1)
    x = jnp.pad(x, ((0, bp - B), (0, din_p - din_aug)))
    x_t = x.T.astype(compute_dtype)                       # (din_p, bp)

    itemsize = jnp.dtype(compute_dtype).itemsize
    flops = 2 * bp * (din_p * (a3_off + h3d) + h1d * h2d + h2d * h3d + h3d)
    bytes_accessed = ((x_t.size + wa_c.size + w2_c.size + w3h_c.size) * itemsize
                      + pack.size * 4 + bp * 4)

    kernel = functools.partial(_critic_kernel, h1d, h2d, h3d, a3_off, hoff)

    out = pl.pallas_call(
        kernel,
        out_shape=jax.ShapeDtypeStruct((1, bp), jnp.float32),   # lane-dense q row
        grid=(num_tiles,),
        in_specs=[
            pl.BlockSpec((din_p, tile_b), lambda i: (0, i)),    # batch-tiled input
            pl.BlockSpec(wa_c.shape, lambda i: (0, 0)),         # VMEM-resident
            pl.BlockSpec(w2_c.shape, lambda i: (0, 0)),         # VMEM-resident
            pl.BlockSpec(w3h_c.shape, lambda i: (0, 0)),        # VMEM-resident
            pl.BlockSpec(pack.shape, lambda i: (0, 0)),         # VMEM-resident
        ],
        out_specs=pl.BlockSpec((1, tile_b), lambda i: (0, i)),
        compiler_params=pltpu.CompilerParams(
            dimension_semantics=("parallel",),
            vmem_limit_bytes=32 * 1024 * 1024),
        cost_estimate=pl.CostEstimate(
            flops=int(flops), transcendentals=0,
            bytes_accessed=int(bytes_accessed)),
    )(x_t, wa_c, w2_c, w3h_c, pack)

    # Padded rows (bp > B) carry garbage q values; they are sliced off here.
    return out.reshape(bp)[:B].reshape(B, 1)


# -----------------------------------------------------------------------------
# Deterministic parameter init (orthogonal weights, gain=1, zero bias),
# mirroring init_weights() in the PyTorch module.
# -----------------------------------------------------------------------------
def _orthogonal(key, in_dim, out_dim, gain=1.0):
    rows, cols = out_dim, in_dim
    a = jax.random.normal(key, (max(rows, cols), min(rows, cols)),
                          dtype=jnp.float32)
    q, r = jnp.linalg.qr(a)
    d = jnp.diagonal(r)
    q = q * jnp.where(d == 0, 1.0, jnp.sign(d))
    if rows < cols:
        q = q.T
    w = gain * q[:rows, :cols]           # (out, in), as nn.init.orthogonal_
    return w.T.astype(jnp.float32)       # stored as (in, out): forward is x @ W


def init_params(key, obs_dim, act_dim, hidden_sizes):
    h1, h2, h3 = hidden_sizes
    k1, k2, k3, k4 = jax.random.split(key, 4)
    return {
        "w1": _orthogonal(k1, obs_dim + act_dim, h1),
        "b1": jnp.zeros((h1,), jnp.float32),
        "w2": _orthogonal(k2, h1, h2),
        "b2": jnp.zeros((h2,), jnp.float32),
        "w3": _orthogonal(k3, h2 + act_dim, h3),
        "b3": jnp.zeros((h3,), jnp.float32),
        "w4": _orthogonal(k4, h3, 1),
        "b4": jnp.zeros((1,), jnp.float32),
    }
    # TODO(synk): net_target / forward_target is a deepcopy with an identical
    # forward; reuse this same kernel with a second (copied) parameter pytree.


# -----------------------------------------------------------------------------
# Pure-JAX f32 reference (matches the PyTorch forward).
# -----------------------------------------------------------------------------
def reference_forward(obs, act, p):
    x = jnp.concatenate([obs, act], axis=-1)
    h1 = jnp.maximum(x @ p["w1"] + p["b1"], 0.0)
    h2 = jnp.maximum(h1 @ p["w2"] + p["b2"], 0.0)
    x3 = jnp.concatenate([h2, act], axis=-1)
    h3 = jnp.maximum(x3 @ p["w3"] + p["b3"], 0.0)
    return h3 @ p["w4"] + p["b4"]


if __name__ == "__main__":
    obs_dim, act_dim = 16, 8
    hidden_sizes = [32, 32, 32]

    key = jax.random.PRNGKey(0)
    k_obs, k_act, k_params = jax.random.split(key, 3)
    params = init_params(k_params, obs_dim, act_dim, hidden_sizes)

    # Case 1: batch that tiles evenly -> grid=(2,) exercises the parallel axis.
    batch = 256
    obs = jax.random.normal(k_obs, (batch, obs_dim), dtype=jnp.float32)
    act = jax.random.normal(k_act, (batch, act_dim), dtype=jnp.float32)
    q = jax.block_until_ready(mlp_critic_td3_forward(obs, act, params))
    q_ref = reference_forward(obs, act, params)
    assert q.shape == (batch, 1)
    # bf16 inputs / f32 accumulation: allow small quantization error vs f32 ref.
    assert jnp.allclose(q, q_ref, atol=5e-2, rtol=5e-2), float(
        jnp.max(jnp.abs(q - q_ref)))

    # Case 2: ragged batch -> padding + single-tile path.
    batch2 = 50
    q2 = jax.block_until_ready(
        mlp_critic_td3_forward(obs[:batch2], act[:batch2], params))
    q2_ref = reference_forward(obs[:batch2], act[:batch2], params)
    assert q2.shape == (batch2, 1)
    assert jnp.allclose(q2, q2_ref, atol=5e-2, rtol=5e-2), float(
        jnp.max(jnp.abs(q2 - q2_ref)))

    print("KERNEL_OK")
</pallas_src>

<mosaic_0001>
module attributes {stable_mosaic.version = 11 : i64} {
  func.func @_critic_kernel(%arg0: i32, %arg1: memref<32x128xbf16, #tpu.memory_space<vmem>>, %arg2: memref<64x32xbf16, #tpu.memory_space<vmem>>, %arg3: memref<32x32xbf16, #tpu.memory_space<vmem>>, %arg4: memref<32x32xbf16, #tpu.memory_space<vmem>>, %arg5: memref<96x1xf32, #tpu.memory_space<vmem>>, %arg6: memref<1x128xf32, #tpu.memory_space<vmem>>) attributes {dimension_semantics = [#tpu.dimension_semantics<parallel>], iteration_bounds = array<i64: 2>, scalar_prefetch = 0 : i64, scratch_operands = 0 : i64, tpu.core_type = #tpu.core_type<tc>, window_params = [{transform_indices = @transform_0, window_bounds = array<i64: 32, 128>}, {pipeline_mode = #tpu.pipeline_mode<synchronous>, transform_indices = @transform_1, window_bounds = array<i64: 64, 32>}, {pipeline_mode = #tpu.pipeline_mode<synchronous>, transform_indices = @transform_2, window_bounds = array<i64: 32, 32>}, {pipeline_mode = #tpu.pipeline_mode<synchronous>, transform_indices = @transform_3, window_bounds = array<i64: 32, 32>}, {pipeline_mode = #tpu.pipeline_mode<synchronous>, transform_indices = @transform_4, window_bounds = array<i64: 96, 1>}, {transform_indices = @transform_5, window_bounds = array<i64: 1, 128>}]} {
    %c0 = arith.constant 0 : index
    %c0_0 = arith.constant 0 : index
    %0 = vector.load %arg5[%c0, %c0_0] : memref<96x1xf32, #tpu.memory_space<vmem>>, vector<32x1xf32>
    %c32 = arith.constant 32 : index
    %c0_1 = arith.constant 0 : index
    %1 = vector.load %arg5[%c32, %c0_1] : memref<96x1xf32, #tpu.memory_space<vmem>>, vector<32x1xf32>
    %c64 = arith.constant 64 : index
    %c0_2 = arith.constant 0 : index
    %2 = vector.load %arg5[%c64, %c0_2] : memref<96x1xf32, #tpu.memory_space<vmem>>, vector<1x1xf32>
    %c0_3 = arith.constant 0 : index
    %c0_4 = arith.constant 0 : index
    %3 = vector.load %arg2[%c0_3, %c0_4] : memref<64x32xbf16, #tpu.memory_space<vmem>>, vector<64x32xbf16>
    %c0_5 = arith.constant 0 : index
    %c0_6 = arith.constant 0 : index
    %4 = vector.load %arg1[%c0_5, %c0_6] : memref<32x128xbf16, #tpu.memory_space<vmem>>, vector<32x128xbf16>
    %cst = arith.constant dense<0.000000e+00> : vector<64x128xf32>
    %5 = tpu.matmul %3, %4, %cst {dimension_numbers = #tpu.dot_dimension_numbers<[1], [0], [0], [1], [0, 0, 1, 1], [], []>} : vector<64x32xbf16>, vector<32x128xbf16>, vector<64x128xf32> -> vector<64x128xf32>
    %6 = vector.extract_strided_slice %5 {offsets = [0, 0], sizes = [32, 128], strides = [1, 1]} : vector<64x128xf32> to vector<32x128xf32>
    %cst_7 = arith.constant 0.000000e+00 : f32
    %7 = vector.broadcast %cst_7 : f32 to vector<32x128xf32>
    %8 = arith.maximumf %6, %7 : vector<32x128xf32>
    %c0_8 = arith.constant 0 : index
    %c0_9 = arith.constant 0 : index
    %9 = vector.load %arg3[%c0_8, %c0_9] : memref<32x32xbf16, #tpu.memory_space<vmem>>, vector<32x32xbf16>
    %10 = arith.truncf %8 : vector<32x128xf32> to vector<32x128xbf16>
    %cst_10 = arith.constant dense<0.000000e+00> : vector<32x128xf32>
    %11 = tpu.matmul %9, %10, %cst_10 {dimension_numbers = #tpu.dot_dimension_numbers<[1], [0], [0], [1], [0, 0, 1, 1], [], []>} : vector<32x32xbf16>, vector<32x128xbf16>, vector<32x128xf32> -> vector<32x128xf32>
    %12 = vector.broadcast %0 : vector<32x1xf32> to vector<32x128xf32>
    %13 = arith.addf %11, %12 : vector<32x128xf32>
    %cst_11 = arith.constant 0.000000e+00 : f32
    %14 = vector.broadcast %cst_11 : f32 to vector<32x128xf32>
    %15 = arith.maximumf %13, %14 : vector<32x128xf32>
    %c0_12 = arith.constant 0 : index
    %c0_13 = arith.constant 0 : index
    %16 = vector.load %arg4[%c0_12, %c0_13] : memref<32x32xbf16, #tpu.memory_space<vmem>>, vector<32x32xbf16>
    %17 = arith.truncf %15 : vector<32x128xf32> to vector<32x128xbf16>
    %cst_14 = arith.constant dense<0.000000e+00> : vector<32x128xf32>
    %18 = tpu.matmul %16, %17, %cst_14 {dimension_numbers = #tpu.dot_dimension_numbers<[1], [0], [0], [1], [0, 0, 1, 1], [], []>} : vector<32x32xbf16>, vector<32x128xbf16>, vector<32x128xf32> -> vector<32x128xf32>
    %19 = vector.extract_strided_slice %5 {offsets = [32, 0], sizes = [32, 128], strides = [1, 1]} : vector<64x128xf32> to vector<32x128xf32>
    %20 = arith.addf %18, %19 : vector<32x128xf32>
    %cst_15 = arith.constant 0.000000e+00 : f32
    %21 = vector.broadcast %cst_15 : f32 to vector<32x128xf32>
    %22 = arith.maximumf %20, %21 : vector<32x128xf32>
    %23 = vector.broadcast %1 : vector<32x1xf32> to vector<32x128xf32>
    %24 = arith.mulf %22, %23 : vector<32x128xf32>
    %cst_16 = arith.constant dense<0.000000e+00> : vector<128xf32>
    %25 = vector.multi_reduction <add>, %24, %cst_16 [0] : vector<32x128xf32> to vector<128xf32>
    %26 = vector.shape_cast %25 : vector<128xf32> to vector<1x128xf32>
    %27 = vector.broadcast %2 : vector<1x1xf32> to vector<1x128xf32>
    %28 = arith.addf %26, %27 : vector<1x128xf32>
    %c0_17 = arith.constant 0 : index
    %c0_18 = arith.constant 0 : index
    %29 = vector.load %arg6[%c0_17, %c0_18] : memref<1x128xf32, #tpu.memory_space<vmem>>, vector<1x128xf32>
    tpu.vector_store %arg6[%c0_17, %c0_18], %28 {strides = array<i32>} : memref<1x128xf32, #tpu.memory_space<vmem>>, vector<1x128xf32>,
    return
  }
  func.func @transform_0(%arg0: i32) -> (i32, i32) {
    %c0_i32 = arith.constant 0 : i32
    %c0_i32_0 = arith.constant 0 : i32
    return %c0_i32, %arg0 : i32, i32
  }
  func.func @transform_1(%arg0: i32) -> (i32, i32) {
    %c0_i32 = arith.constant 0 : i32
    %c0_i32_0 = arith.constant 0 : i32
    %c0_i32_1 = arith.constant 0 : i32
    return %c0_i32, %c0_i32_0 : i32, i32
  }
  func.func @transform_2(%arg0: i32) -> (i32, i32) {
    %c0_i32 = arith.constant 0 : i32
    %c0_i32_0 = arith.constant 0 : i32
    %c0_i32_1 = arith.constant 0 : i32
    return %c0_i32, %c0_i32_0 : i32, i32
  }
  func.func @transform_3(%arg0: i32) -> (i32, i32) {
    %c0_i32 = arith.constant 0 : i32
    %c0_i32_0 = arith.constant 0 : i32
    %c0_i32_1 = arith.constant 0 : i32
    return %c0_i32, %c0_i32_0 : i32, i32
  }
  func.func @transform_4(%arg0: i32) -> (i32, i32) {
    %c0_i32 = arith.constant 0 : i32
    %c0_i32_0 = arith.constant 0 : i32
    %c0_i32_1 = arith.constant 0 : i32
    return %c0_i32, %c0_i32_0 : i32, i32
  }
  func.func @transform_5(%arg0: i32) -> (i32, i32) {
    %c0_i32 = arith.constant 0 : i32
    %c0_i32_0 = arith.constant 0 : i32
    return %c0_i32, %arg0 : i32, i32
  }
}

</mosaic_0001>

<llo_original>
// kernel: tpu_custom_call.1
$region0: #{tpu_custom_call.1}
  #allocation0 [shape = 'u32[]', space=smem, size = 0x4, offset = 0x4, fixed_abs, tag = 'smem constant byte address 0x4 - core index']
  #allocation1 [shape = 'u32[72,128]{1,0:T(1,128)}', space=vmem, size = 0x9000, scoped, tag = 'internal scratch']
  %s0 = inlined_call_operand.vmem [shape: bf16[32,256], index: 0, kind: input, shape index: {}]
  %s1 = inlined_call_operand.vmem [shape: bf16[64,32], index: 1, kind: input, shape index: {}]
  %s2 = inlined_call_operand.vmem [shape: bf16[32,32], index: 2, kind: input, shape index: {}]
  %s3 = inlined_call_operand.vmem [shape: bf16[32,32], index: 3, kind: input, shape index: {}]
  %s4 = inlined_call_operand.vmem [shape: f32[96,1], index: 4, kind: input, shape index: {}]
  %s5 = inlined_call_operand.hbm [shape: f32[1,256], index: 5, kind: output, shape index: {}]
  %s6 = sld [smem:[#allocation0]]
  $region94: #{tpu_custom_call.1} parent=0
    _
  %s8 = ssub.s32 1, %s6
  %s9 = scalar_select 0, %s8, %s6
  $region1: #{tpu_custom_call.1} parent=0
    #allocation2 [shape = 'u8[16384]{0}', space=vmem, size = 0x4000, scoped, tag = 'input window, operand 0']
    #allocation3 [shape = 'u8[1024]{0}', space=vmem, size = 0x400, scoped, tag = 'output window, operand 0']
    #allocation4 [shape = 's32[2]{0}', space=sflag, size = 0x8, scoped, tag = 'scoped memory for tpu_custom_call.1']
    %10 = vsyncpa [#allocation4], 0
    %s11 = scalar_lea.sflag [#allocation4], 1
    %12 = vsyncpa %s11, 0
    loop: start=0, step=1, limit=4
    $region2: #{tpu_custom_call.1} parent=1 // loop_pre_header
      _
    $region3: #{tpu_custom_call.1} parent=1 // loop_header
      %s14 = sphi 0, %s18
      %p15 = scmp.ge.s32.totalorder %s14, 4
      %s24 = sphi 0, %s26
      %s27 = sphi 0, %s24
      %s28 = sphi 0, %s27
      %s44 = sphi 0, %s28
      %s48 = sphi 0, %s48
      %s50 = sphi 0, %s48
      %s51 = sphi 0, %s50
      %s65 = sphi 0, %s51
      %s69 = sphi 0, %s69
      %s71 = sphi 0, %s69
      %s72 = sphi 0, %s71
      %s86 = sphi 0, %s72
      %s90 = sphi 0, %s90
      %s92 = sphi 0, %s90
      %s93 = sphi 0, %s92
      %s107 = sphi 0, %s93
      %s111 = sphi 0, %s111
      %s113 = sphi 0, %s111
      %s114 = sphi 0, %s113
      %s128 = sphi 0, %s114
      %s134 = sphi 0, %s136
      %s137 = sphi 0, %s134
      %s138 = sphi 0, %s137
      %s154 = sphi 0, %s138
    $region4: #{tpu_custom_call.1} parent=1 // loop_header_branch
      %17 = sbr.rel (%p15) target = $region8
    $region5: #{tpu_custom_call.1} parent=1 // loop_body
      %s19 = ssub.s32 %s14, 1
      %s20 = ssub.s32 %s14, 2
      %s21 = sadd.s32 %s14, 1
      %s22 = ssub.s32 %s14, %s21
      %p23 = scmp.eq.s32.totalorder %s22, 0
      %s25 = sadd.s32 %s24, 1
      %s26 = scalar_select %p23, %s24, %s25
      %p29 = pneg %p23
      %p30 = scmp.eq.s32.totalorder %s14, 1
      %p31 = por %p29, %p30
      %p32 = scmp.ne.s32.totalorder %s24, %s27
      %p33 = scmp.eq.s32.totalorder %s14, 0
      %p34 = por %p32, %p33
      %p35 = scmp.ne.s32.totalorder %s24, %s27
      %p36 = scmp.eq.s32.totalorder %s19, 1
      %p37 = por %p35, %p36
      %p38 = scmp.ne.s32.totalorder %s27, %s28
      %p39 = scmp.eq.s32.totalorder %s19, 0
      %p40 = por %p38, %p39
      %p41 = scmp.ne.s32.totalorder %s27, %s28
      %p42 = scmp.eq.s32.totalorder %s20, 1
      %p43 = por %p41, %p42
      %p45 = scmp.ne.s32.totalorder %s28, %s44
      %p46 = scmp.eq.s32.totalorder %s20, 0
      %p47 = por %p45, %p46
      %s49 = sadd.s32 %s48, 1
      %p52 = scmp.eq.s32.totalorder %s14, 1
      %p53 = scmp.ne.s32.totalorder %s48, %s50
      %p54 = scmp.eq.s32.totalorder %s14, 0
      %p55 = por %p53, %p54
      %p56 = scmp.ne.s32.totalorder %s48, %s50
      %p57 = scmp.eq.s32.totalorder %s19, 1
      %p58 = por %p56, %p57
      %p59 = scmp.ne.s32.totalorder %s50, %s51
      %p60 = scmp.eq.s32.totalorder %s19, 0
      %p61 = por %p59, %p60
      %p62 = scmp.ne.s32.totalorder %s50, %s51
      %p63 = scmp.eq.s32.totalorder %s20, 1
      %p64 = por %p62, %p63
      %p66 = scmp.ne.s32.totalorder %s51, %s65
      %p67 = scmp.eq.s32.totalorder %s20, 0
      %p68 = por %p66, %p67
      %s70 = sadd.s32 %s69, 1
      %p73 = scmp.eq.s32.totalorder %s14, 1
      %p74 = scmp.ne.s32.totalorder %s69, %s71
      %p75 = scmp.eq.s32.totalorder %s14, 0
      %p76 = por %p74, %p75
      %p77 = scmp.ne.s32.totalorder %s69, %s71
      %p78 = scmp.eq.s32.totalorder %s19, 1
      %p79 = por %p77, %p78
      %p80 = scmp.ne.s32.totalorder %s71, %s72
      %p81 = scmp.eq.s32.totalorder %s19, 0
      %p82 = por %p80, %p81
      %p83 = scmp.ne.s32.totalorder %s71, %s72
      %p84 = scmp.eq.s32.totalorder %s20, 1
      %p85 = por %p83, %p84
      %p87 = scmp.ne.s32.totalorder %s72, %s86
      %p88 = scmp.eq.s32.totalorder %s20, 0
      %p89 = por %p87, %p88
      %s91 = sadd.s32 %s90, 1
      %p94 = scmp.eq.s32.totalorder %s14, 1
      %p95 = scmp.ne.s32.totalorder %s90, %s92
      %p96 = scmp.eq.s32.totalorder %s14, 0
      %p97 = por %p95, %p96
      %p98 = scmp.ne.s32.totalorder %s90, %s92
      %p99 = scmp.eq.s32.totalorder %s19, 1
      %p100 = por %p98, %p99
      %p101 = scmp.ne.s32.totalorder %s92, %s93
      %p102 = scmp.eq.s32.totalorder %s19, 0
      %p103 = por %p101, %p102
      %p104 = scmp.ne.s32.totalorder %s92, %s93
      %p105 = scmp.eq.s32.totalorder %s20, 1
      %p106 = por %p104, %p105
      %p108 = scmp.ne.s32.totalorder %s93, %s107
      %p109 = scmp.eq.s32.totalorder %s20, 0
      %p110 = por %p108, %p109
      %s112 = sadd.s32 %s111, 1
      %p115 = scmp.eq.s32.totalorder %s14, 1
      %p116 = scmp.ne.s32.totalorder %s111, %s113
      %p117 = scmp.eq.s32.totalorder %s14, 0
      %p118 = por %p116, %p117
      %p119 = scmp.ne.s32.totalorder %s111, %s113
      %p120 = scmp.eq.s32.totalorder %s19, 1
      %p121 = por %p119, %p120
      %p122 = scmp.ne.s32.totalorder %s113, %s114
      %p123 = scmp.eq.s32.totalorder %s19, 0
      %p124 = por %p122, %p123
      %p125 = scmp.ne.s32.totalorder %s113, %s114
      %p126 = scmp.eq.s32.totalorder %s20, 1
      %p127 = por %p125, %p126
      %p129 = scmp.ne.s32.totalorder %s114, %s128
      %p130 = scmp.eq.s32.totalorder %s20, 0
      %p131 = por %p129, %p130
      %s132 = ssub.s32 %s14, %s21
      %p133 = scmp.eq.s32.totalorder %s132, 0
      %s135 = sadd.s32 %s134, 1
      %s136 = scalar_select %p133, %s134, %s135
      %p139 = pneg %p133
      %p140 = scmp.eq.s32.totalorder %s14, 1
      %p141 = por %p139, %p140
      %p142 = scmp.ne.s32.totalorder %s134, %s137
      %p143 = scmp.eq.s32.totalorder %s14, 0
      %p144 = por %p142, %p143
      %p145 = scmp.ne.s32.totalorder %s134, %s137
      %p146 = scmp.eq.s32.totalorder %s19, 1
      %p147 = por %p145, %p146
      %p148 = scmp.ne.s32.totalorder %s137, %s138
      %p149 = scmp.eq.s32.totalorder %s19, 0
      %p150 = por %p148, %p149
      %p151 = scmp.ne.s32.totalorder %s137, %s138
      %p152 = scmp.eq.s32.totalorder %s20, 1
      %p153 = por %p151, %p152
      %p155 = scmp.ne.s32.totalorder %s138, %s154
      %p156 = scmp.eq.s32.totalorder %s20, 0
      %p157 = por %p155, %p156
      %p158 = scmp.le.s32.totalorder 1, %s14
      %p159 = scmp.lt.s32.totalorder %s14, 3
      %p160 = pnand %p158, %p159
      %p161 = pneg %p160
      // Predicated region
      $region9: #{tpu_custom_call.1} parent=5 // pred_check
        _
      $region10: #{tpu_custom_call.1} parent=5 // pred_check_branch
        %163 = sbr.rel (%p160) target = $region12
      $region11: #{tpu_custom_call.1} parent=5 // pred_region
        %s164 = ssub.s32 %s14, 1
        // Predicated region
        $region13: #{tpu_custom_call.1} parent=11 // pred_check
          %p165 = pneg %p61
        $region14: #{tpu_custom_call.1} parent=11 // pred_check_branch
          %167 = sbr.rel (%p165) target = $region16
        $region15: #{tpu_custom_call.1} parent=11 // pred_region
          _
        $region16: #{tpu_custom_call.1} parent=11 // pred_fallthru
          _
        // Predicated region
        $region17: #{tpu_custom_call.1} parent=11 // pred_check
          %p168 = pneg %p82
        $region18: #{tpu_custom_call.1} parent=11 // pred_check_branch
          %170 = sbr.rel (%p168) target = $region20
        $region19: #{tpu_custom_call.1} parent=11 // pred_region
          _
        $region20: #{tpu_custom_call.1} parent=11 // pred_fallthru
          _
        // Predicated region
        $region21: #{tpu_custom_call.1} parent=11 // pred_check
          %p171 = pneg %p103
        $region22: #{tpu_custom_call.1} parent=11 // pred_check_branch
          %173 = sbr.rel (%p171) target = $region24
        $region23: #{tpu_custom_call.1} parent=11 // pred_region
          _
        $region24: #{tpu_custom_call.1} parent=11 // pred_fallthru
          _
        // Predicated region
        $region25: #{tpu_custom_call.1} parent=11 // pred_check
          %p174 = pneg %p124
        $region26: #{tpu_custom_call.1} parent=11 // pred_check_branch
          %176 = sbr.rel (%p174) target = $region28
        $region27: #{tpu_custom_call.1} parent=11 // pred_region
          _
        $region28: #{tpu_custom_call.1} parent=11 // pred_fallthru
          _
      $region12: #{tpu_custom_call.1} parent=5 // pred_fallthru
        _
      %p177 = scmp.lt.s32.totalorder %s14, 2
      // Predicated region
      $region29: #{tpu_custom_call.1} parent=5 // pred_check
        %p178 = pneg %p177
      $region30: #{tpu_custom_call.1} parent=5 // pred_check_branch
        %180 = sbr.rel (%p178) target = $region32
      $region31: #{tpu_custom_call.1} parent=5 // pred_region
        // Predicated region
        $region33: #{tpu_custom_call.1} parent=31 // pred_check
          %p181 = pneg %p34
        $region34: #{tpu_custom_call.1} parent=31 // pred_check_branch
          %183 = sbr.rel (%p181) target = $region36
        $region35: #{tpu_custom_call.1} parent=31 // pred_region
          %s184 = sand.u32 %s24, 1
          %s185 = sand.u32 %s24, 1
          %s186 = smul.addr %s185, 16
          %s187 = scalar_lea.vmem [#allocation2], %s186
          %s188 = smul.addr %s14, 4
          %s189 = scalar_lea.vmem %s0, %s188
          // Predicated region
          $region37: #{tpu_custom_call.1} parent=35 // pred_check
            _
          $region38: #{tpu_custom_call.1} parent=35 // pred_check_branch
            %191 = sbr.rel (0) target = $region40
          $region39: #{tpu_custom_call.1} parent=35 // pred_region
            // Predicated region
            $region41: #{tpu_custom_call.1} parent=39 // pred_check
              _
            $region42: #{tpu_custom_call.1} parent=39 // pred_check_branch
              %193 = sbr.rel target = $region44
            $region43: #{tpu_custom_call.1} parent=39 // pred_region
              // Predicated region
              $region56: #{tpu_custom_call.1} parent=43 // pred_check
                _
              $region57: #{tpu_custom_call.1} parent=43 // pred_check_branch
                %215 = sbr.rel (0) target = $region59
              $region58: #{tpu_custom_call.1} parent=43 // pred_region
                loop: start=0, step=1, limit=1
                $region60: #{tpu_custom_call.1} parent=58 // loop_pre_header
                  _
                $region61: #{tpu_custom_call.1} parent=58 // loop_header
                  %s217 = sphi 0, %s221
                  %p218 = scmp.ge.s32.totalorder %s217, 1
                  %s222 = sphi %s189, %s189
                  %s223 = sphi %s187, %s187
                $region62: #{tpu_custom_call.1} parent=58 // loop_header_branch
                  %220 = sbr.rel (%p218) target = $region66
                $region63: #{tpu_custom_call.1} parent=58 // loop_body
                  _
                $region64: #{tpu_custom_call.1} parent=58 // loop_footer
                  %s221 = sadd.s32 1, %s217
                $region65: #{tpu_custom_call.1} parent=58 // loop_footer_branch
                  %216 = sbr.rel target = $region61
                $region66: #{tpu_custom_call.1} parent=58 // loop_exit
                  _
                %s225 = ssub.s32 16, 1
                loop: start=0, step=1, limit=1
                $region67: #{tpu_custom_call.1} parent=58 // loop_pre_header
                  _
                $region68: #{tpu_custom_call.1} parent=58 // loop_header
                  %s227 = sphi 0, %s231
                  %p228 = scmp.ge.s32.totalorder %s227, 1
                  %s232 = sphi %s189, %s189
                  %s233 = sphi %s187, %s187
                $region69: #{tpu_custom_call.1} parent=58 // loop_header_branch
                  %230 = sbr.rel (%p228) target = $region73
                $region70: #{tpu_custom_call.1} parent=58 // loop_body
                  %v234 = vld [vmem:[%s232] sm:%s225]
                  %235 = vst [vmem:[%s233] sm:%s225] %v234
                  %v236 = vld [vmem:[%s232 + $0x8] sm:%s225]
                  %237 = vst [vmem:[%s233 + $0x4] sm:%s225] %v236
                  %v238 = vld [vmem:[%s232 + $0x10] sm:%s225]
                  %239 = vst [vmem:[%s233 + $0x8] sm:%s225] %v238
                  %v240 = vld [vmem:[%s232 + $0x18] sm:%s225]
                  %241 = vst [vmem:[%s233 + $0xc] sm:%s225] %v240
                $region71: #{tpu_custom_call.1} parent=58 // loop_footer
                  %s231 = sadd.s32 1, %s227
                $region72: #{tpu_custom_call.1} parent=58 // loop_footer_branch
                  %226 = sbr.rel target = $region68
                $region73: #{tpu_custom_call.1} parent=58 // loop_exit
                  _
              $region59: #{tpu_custom_call.1} parent=43 // pred_fallthru
                _
            $region44: #{tpu_custom_call.1} parent=39 // pred_fallthru
              _
            // Predicated region
            $region45: #{tpu_custom_call.1} parent=39 // pred_check
              _
            $region46: #{tpu_custom_call.1} parent=39 // pred_check_branch
              %195 = sbr.rel (0) target = $region48
            $region47: #{tpu_custom_call.1} parent=39 // pred_region
              %s197 = ssub.s32 16, 1
              loop: start=0, step=1, limit=1
              $region49: #{tpu_custom_call.1} parent=47 // loop_pre_header
                _
              $region50: #{tpu_custom_call.1} parent=47 // loop_header
                %s199 = sphi 0, %s203
                %p200 = scmp.ge.s32.totalorder %s199, 1
                %s204 = sphi %s189, %s189
                %s205 = sphi %s187, %s187
              $region51: #{tpu_custom_call.1} parent=47 // loop_header_branch
                %202 = sbr.rel (%p200) target = $region55
              $region52: #{tpu_custom_call.1} parent=47 // loop_body
                %v206 = vld [vmem:[%s204] sm:%s197]
                %207 = vst [vmem:[%s205] sm:%s197] %v206
                %v208 = vld [vmem:[%s204 + $0x8] sm:%s197]
                %209 = vst [vmem:[%s205 + $0x4] sm:%s197] %v208
                %v210 = vld [vmem:[%s204 + $0x10] sm:%s197]
                %211 = vst [vmem:[%s205 + $0x8] sm:%s197] %v210
                %v212 = vld [vmem:[%s204 + $0x18] sm:%s197]
                %213 = vst [vmem:[%s205 + $0xc] sm:%s197] %v212
              $region53: #{tpu_custom_call.1} parent=47 // loop_footer
                %s203 = sadd.s32 1, %s199
              $region54: #{tpu_custom_call.1} parent=47 // loop_footer_branch
                %198 = sbr.rel target = $region50
              $region55: #{tpu_custom_call.1} parent=47 // loop_exit
                _
            $region48: #{tpu_custom_call.1} parent=39 // pred_fallthru
              _
          $region40: #{tpu_custom_call.1} parent=35 // pred_fallthru
            _
          %242 = vnop
        $region36: #{tpu_custom_call.1} parent=31 // pred_fallthru
          _
      $region32: #{tpu_custom_call.1} parent=5 // pred_fallthru
        _
      %p243 = scmp.le.s32.totalorder 1, %s14
      %p244 = scmp.lt.s32.totalorder %s14, 3
      %p245 = pnand %p243, %p244
      %p246 = pneg %p245
      // Predicated region
      $region74: #{tpu_custom_call.1} parent=5 // pred_check
        _
      $region75: #{tpu_custom_call.1} parent=5 // pred_check_branch
        %248 = sbr.rel (%p245) target = $region77
      $region76: #{tpu_custom_call.1} parent=5 // pred_region
        %s249 = ssub.s32 %s14, 1
        %s250 = sand.u32 %s27, 1
        %s251 = sand.u32 %s27, 1
        %s252 = smul.addr %s251, 16
        %s253 = scalar_lea.vmem [#allocation2], %s252
        // Predicated region
        $region78: #{tpu_custom_call.1} parent=76 // pred_check
          %p254 = pneg %p40
        $region79: #{tpu_custom_call.1} parent=76 // pred_check_branch
          %256 = sbr.rel (%p254) target = $region81
        $region80: #{tpu_custom_call.1} parent=76 // pred_region
          _
        $region81: #{tpu_custom_call.1} parent=76 // pred_fallthru
          _
        %s257 = sand.u32 %s27, 1
        %s258 = sand.u32 %s27, 1
        %s259 = smul.addr %s258, 16
        %s260 = scalar_lea.vmem [#allocation2], %s259
        %p261 = pneg %p40
        %p262 = pneg %p37
        %p263 = pneg %p61
        %p264 = pneg %p58
        %p265 = pneg %p82
        %p266 = pneg %p79
        %p267 = pneg %p103
        %p268 = pneg %p100
        %p269 = pneg %p124
        %p270 = pneg %p121
        %p271 = pneg %p150
        %p272 = pneg %p147
        %s273 = sand.u32 %s137, 1
        %s274 = scalar_lea.sflag [#allocation4], %s273
        %s275 = sand.u32 %s137, 1
        %s276 = scalar_lea.vmem [#allocation3], %s275
        %v278 = vld [vmem:[%s4] sm:$0xff]
        %v279 = vld [vmem:[%s4 + $0x8] sm:$0xff]
        %v280 = vld [vmem:[%s4 + $0x10] sm:$0xff]
        %v281 = vld [vmem:[%s4 + $0x18] sm:$0xff]
        %v282 = vld [vmem:[%s4 + $0x20] sm:$0xff]
        %v283 = vld [vmem:[%s4 + $0x28] sm:$0xff]
        %v284 = vld [vmem:[%s4 + $0x30] sm:$0xff]
        %v285 = vld [vmem:[%s4 + $0x38] sm:$0xff]
        %v286 = vld [vmem:[%s4 + $0x40] sm:$0x1]
        %v287 = vld [vmem:[%s1] sm:$0xf]
        %v288 = vld [vmem:[%s1 + $0x4] sm:$0xf]
        %v289 = vld [vmem:[%s1 + $0x8] sm:$0xf]
        %v290 = vld [vmem:[%s1 + $0xc] sm:$0xf]
        %v291 = vld [vmem:[%s1 + $0x10] sm:$0xf]
        %v292 = vld [vmem:[%s1 + $0x14] sm:$0xf]
        %v293 = vld [vmem:[%s1 + $0x18] sm:$0xf]
        %v294 = vld [vmem:[%s1 + $0x1c] sm:$0xf]
        %v295 = vld [vmem:[%s253] sm:$0xf]
        %v296 = vld [vmem:[%s253 + $0x4] sm:$0xf]
        %v297 = vld [vmem:[%s253 + $0x8] sm:$0xf]
        %v298 = vld [vmem:[%s253 + $0xc] sm:$0xf]
        %v307 = vunpack.c.l.b16 %v287
        %v308 = vunpack.c.l.b16 %v288
        %v309 = vunpack.c.l.b16 %v289
        %v310 = vunpack.c.l.b16 %v290
        %v311 = vunpack.c.l.b16 %v291
        %v312 = vunpack.c.l.b16 %v292
        %v313 = vunpack.c.l.b16 %v293
        %v314 = vunpack.c.l.b16 %v294
        %v315 = vpack.c.b16 %v308, %v307
        %v316 = vpack.c.b16 %v310, %v309
        %v317 = vpack.c.b16 %v312, %v311
        %v318 = vpack.c.b16 %v314, %v313
        %v323 = vunpack.c.l.b16 %v295
        %v324 = vunpack.c.l.b16 %v296
        %v325 = vunpack.c.l.b16 %v297
        %v326 = vunpack.c.l.b16 %v298
        %v327 = vpack.c.b16 %v324, %v323
        %v328 = vpack.c.b16 %v326, %v325
        %vm331 = vcmask 261120
        %v333 = vsel %vm331, %v315, 0
        %v336 = vsel %vm331, %v316, 0
        %v339 = vsel %vm331, %v317, 0
        %v342 = vsel %vm331, %v318, 0
        %344 = vmatpush.bf16.msra.mxu0 0
        %345 = vmatpush.bf16.msra.mxu0 0
        %346 = vmatpush.bf16.msra.mxu0 0
        %347 = vmatpush.bf16.msra.mxu0 0
        %348 = vmatpush.bf16.msra.mxu0 0
        %349 = vmatpush.bf16.msra.mxu0 0
        %350 = vmatpush.bf16.msra.mxu0 %v328
        %351 = vmatpush.bf16.msra.mxu0 %v327
        %352 = vmatmul.bf16.gmra.mxu0 %v333
        %v353 = vpop.f32.mrf.mxu0
        %v354 = vadd.f32 0.0, %v353
        %v355 = vpop.f32.mrf.mxu0
        %v356 = vadd.f32 0.0, %v355
        %357 = vmatmul.bf16.gmra.mxu0 %v336
        %v358 = vpop.f32.mrf.mxu0
        %v359 = vadd.f32 0.0, %v358
        %v360 = vpop.f32.mrf.mxu0
        %v361 = vadd.f32 0.0, %v360
        %362 = vmatmul.bf16.gmra.mxu0 %v339
        %v363 = vpop.f32.mrf.mxu0
        %v364 = vadd.f32 0.0, %v363
        %v365 = vpop.f32.mrf.mxu0
        %v366 = vadd.f32 0.0, %v365
        %367 = vmatmul.bf16.gmra.mxu0 %v342
        %v368 = vpop.f32.mrf.mxu0
        %v369 = vadd.f32 0.0, %v368
        %v370 = vpop.f32.mrf.mxu0
        %v371 = vadd.f32 0.0, %v370
        %372 = vdwg.mxu0
        %v373 = vmax.f32 %v354, 0.0
        %v374 = vmax.f32 %v356, 0.0
        %v375 = vmax.f32 %v359, 0.0
        %v376 = vmax.f32 %v361, 0.0
        %v377 = vld [vmem:[%s2] sm:$0xf]
        %v378 = vld [vmem:[%s2 + $0x4] sm:$0xf]
        %v379 = vld [vmem:[%s2 + $0x8] sm:$0xf]
        %v380 = vld [vmem:[%s2 + $0xc] sm:$0xf]
        %v381 = vpack.c.bf16 %v374, %v373
        %v382 = vpack.c.bf16 %v376, %v375
        %384 = vset.pattern.permute.xlu0 0
        %385 = vperm.xlu0 %384, %v278
        %v386 = vpop.permute.xlu0 %385
        %389 = vset.pattern.permute.xlu0 0
        %390 = vperm.xlu0 %389, %v279
        %v391 = vpop.permute.xlu0 %390
        %394 = vset.pattern.permute.xlu0 0
        %395 = vperm.xlu0 %394, %v280
        %v396 = vpop.permute.xlu0 %395
        %399 = vset.pattern.permute.xlu0 0
        %400 = vperm.xlu0 %399, %v281
        %v401 = vpop.permute.xlu0 %400
        %v407 = vunpack.c.l.b16 %v377
        %v408 = vunpack.c.l.b16 %v378
        %v409 = vunpack.c.l.b16 %v379
        %v410 = vunpack.c.l.b16 %v380
        %v411 = vpack.c.b16 %v408, %v407
        %v412 = vpack.c.b16 %v410, %v409
        %v414 = vsel %vm331, %v411, 0
        %v417 = vsel %vm331, %v412, 0
        %419 = vmatpush.bf16.msra.mxu0 0
        %420 = vmatpush.bf16.msra.mxu0 0
        %421 = vmatpush.bf16.msra.mxu0 0
        %422 = vmatpush.bf16.msra.mxu0 0
        %423 = vmatpush.bf16.msra.mxu0 0
        %424 = vmatpush.bf16.msra.mxu0 0
        %425 = vmatpush.bf16.msra.mxu0 %v382
        %426 = vmatpush.bf16.msra.mxu0 %v381
        %427 = vmatmul.bf16.gmra.mxu0 %v414
        %v428 = vpop.f32.mrf.mxu0
        %v429 = vadd.f32 %v386, %v428
        %v430 = vpop.f32.mrf.mxu0
        %v431 = vadd.f32 %v391, %v430
        %432 = vmatmul.bf16.gmra.mxu0 %v417
        %v433 = vpop.f32.mrf.mxu0
        %v434 = vadd.f32 %v396, %v433
        %v435 = vpop.f32.mrf.mxu0
        %v436 = vadd.f32 %v401, %v435
        %437 = vdwg.mxu0
        %v438 = vmax.f32 %v429, 0.0
        %v439 = vmax.f32 %v431, 0.0
        %v440 = vmax.f32 %v434, 0.0
        %v441 = vmax.f32 %v436, 0.0
        %v442 = vld [vmem:[%s3] sm:$0xf]
        %v443 = vld [vmem:[%s3 + $0x4] sm:$0xf]
        %v444 = vld [vmem:[%s3 + $0x8] sm:$0xf]
        %v445 = vld [vmem:[%s3 + $0xc] sm:$0xf]
        %v446 = vpack.c.bf16 %v439, %v438
        %v447 = vpack.c.bf16 %v441, %v440
        %v452 = vunpack.c.l.b16 %v442
        %v453 = vunpack.c.l.b16 %v443
        %v454 = vunpack.c.l.b16 %v444
        %v455 = vunpack.c.l.b16 %v445
        %v456 = vpack.c.b16 %v453, %v452
        %v457 = vpack.c.b16 %v455, %v454
        %v459 = vsel %vm331, %v456, 0
        %v462 = vsel %vm331, %v457, 0
        %464 = vmatpush.bf16.msra.mxu0 0
        %465 = vmatpush.bf16.msra.mxu0 0
        %466 = vmatpush.bf16.msra.mxu0 0
        %467 = vmatpush.bf16.msra.mxu0 0
        %468 = vmatpush.bf16.msra.mxu0 0
        %469 = vmatpush.bf16.msra.mxu0 0
        %470 = vmatpush.bf16.msra.mxu0 %v447
        %471 = vmatpush.bf16.msra.mxu0 %v446
        %472 = vmatmul.bf16.gmra.mxu0 %v459
        %v473 = vpop.f32.mrf.mxu0
        %v474 = vadd.f32 %v364, %v473
        %v475 = vpop.f32.mrf.mxu0
        %v476 = vadd.f32 %v366, %v475
        %477 = vmatmul.bf16.gmra.mxu0 %v462
        %v478 = vpop.f32.mrf.mxu0
        %v479 = vadd.f32 %v369, %v478
        %v480 = vpop.f32.mrf.mxu0
        %v481 = vadd.f32 %v371, %v480
        %482 = vdwg.mxu0
        %v483 = vmax.f32 %v474, 0.0
        %v484 = vmax.f32 %v476, 0.0
        %v485 = vmax.f32 %v479, 0.0
        %v486 = vmax.f32 %v481, 0.0
        %488 = vset.pattern.permute.xlu0 0
        %489 = vperm.xlu0 %488, %v282
        %v490 = vpop.permute.xlu0 %489
        %493 = vset.pattern.permute.xlu0 0
        %494 = vperm.xlu0 %493, %v283
        %v495 = vpop.permute.xlu0 %494
        %498 = vset.pattern.permute.xlu0 0
        %499 = vperm.xlu0 %498, %v284
        %v500 = vpop.permute.xlu0 %499
        %503 = vset.pattern.permute.xlu0 0
        %504 = vperm.xlu0 %503, %v285
        %v505 = vpop.permute.xlu0 %504
        %v507 = vmul.f32 %v483, %v490
        %v508 = vmul.f32 %v484, %v495
        %v509 = vmul.f32 %v485, %v500
        %v510 = vmul.f32 %v486, %v505
        %v511 = vadd.f32 %v507, %v508
        %v512 = vadd.f32 %v511, %v509
        %v513 = vadd.f32 %v512, %v510
        %v514 = vrot.slane %v513, 4
        %v515 = vadd.f32 %v513, %v514
        %v516 = vrot.slane %v515, 2
        %v517 = vadd.f32 %v515, %v516
        %v518 = vrot.slane %v517, 1
        %v519 = vadd.f32 %v517, %v518
        %521 = vset.pattern.permute.xlu0 0
        %522 = vperm.xlu0 %521, %v286
        %v523 = vpop.permute.xlu0 %522
        %v525 = vadd.f32 %v519, %v523
        %526 = vst [vmem:[%s276] sm:$0x1] %v525
        %s527 = sand.u32 %s137, 1
        %s528 = scalar_lea.sflag [#allocation4], %s527
        %s529 = sand.u32 %s137, 1
        %s530 = scalar_lea.vmem [#allocation3], %s529
        // Predicated region
        $region82: #{tpu_custom_call.1} parent=76 // pred_check
          %p531 = pneg %p147
        $region83: #{tpu_custom_call.1} parent=76 // pred_check_branch
          %533 = sbr.rel (%p531) target = $region85
        $region84: #{tpu_custom_call.1} parent=76 // pred_region
          %535 = vsyncadd %s528, 0
          %s536 = scalar_lea.hbm %s5, %s19
          %s538 = sshll.u32 %s530, 4
          %s539 = int_to_ptr.vmem [resolvable:$true] %s538
          %s540 = sshll.u32 %s536, 4
          %s541 = int_to_ptr.hbm [resolvable:$true] %s540
          %543 = dma.vmem_to_hbm [thread:$0]  %s539, 16, %s541, %s528
        $region85: #{tpu_custom_call.1} parent=76 // pred_fallthru
          _
      $region77: #{tpu_custom_call.1} parent=5 // pred_fallthru
        _
      %p544 = scmp.le.s32.totalorder 2, %s14
      // Predicated region
      $region86: #{tpu_custom_call.1} parent=5 // pred_check
        %p545 = pneg %p544
      $region87: #{tpu_custom_call.1} parent=5 // pred_check_branch
        %547 = sbr.rel (%p545) target = $region89
      $region88: #{tpu_custom_call.1} parent=5 // pred_region
        %s548 = ssub.s32 %s14, 2
        // Predicated region
        $region90: #{tpu_custom_call.1} parent=88 // pred_check
          %p549 = pneg %p153
        $region91: #{tpu_custom_call.1} parent=88 // pred_check_branch
          %551 = sbr.rel (%p549) target = $region93
        $region92: #{tpu_custom_call.1} parent=88 // pred_region
          %s552 = sand.u32 %s138, 1
          %s553 = scalar_lea.sflag [#allocation4], %s552
          %s554 = sand.u32 %s138, 1
          %s555 = scalar_lea.vmem [#allocation3], %s554
          %557 = dma.done %s553, 16
        $region93: #{tpu_custom_call.1} parent=88 // pred_fallthru
          _
      $region89: #{tpu_custom_call.1} parent=5 // pred_fallthru
        _
    $region6: #{tpu_custom_call.1} parent=1 // loop_footer
      %s18 = sadd.s32 1, %s14
    $region7: #{tpu_custom_call.1} parent=1 // loop_footer_branch
      %13 = sbr.rel target = $region3
    $region8: #{tpu_custom_call.1} parent=1 // loop_exit
      _
    %558 = vsyncpa [#allocation4], 1
    %s559 = scalar_lea.sflag [#allocation4], 1
    %560 = vsyncpa %s559, 1

</llo_original>
